<compile_context>
chip_gen: v5e
topology: v5e:2x2
jax: 0.10.0
libtpu: 0.0.40
codegen_flags: <defaults>
</compile_context>

<pallas_src>
import jax
import jax.numpy as jnp
from jax.experimental import pallas as pl
from jax.experimental.pallas import tpu as pltpu

EPS_BN = 1e-5
LANE = 128


def _round_up(x, m):
    return (x + m - 1) // m * m


def _cdiv(a, b):
    return -(-a // b)


def _vmem_limit(needed_bytes):
    """Scoped-VMEM request: needed + headroom, clamped to the physical device cap."""
    try:
        cap = pltpu.get_tpu_info().vmem_capacity_bytes
    except Exception:
        cap = 64 * 1024 * 1024  # conservative (v7x) fallback
    limit = max(int(needed_bytes * 1.5), 32 * 1024 * 1024)
    return int(min(limit, cap * 7 // 8))


def _neck_kernel(x_ref, w1_ref, bn_ref, w2_ref, o_ref):
    # Grid: (core_splits [parallel], hidden tiles per split [arbitrary/reduction]).
    j = pl.program_id(1)

    @pl.when(j == 0)
    def _init():
        o_ref[...] = jnp.zeros_like(o_ref)

    x = x_ref[...]                                        # (N, C), pooled, bf16/f32
    n = x.shape[0]

    # fc1 slice on the MXU: (N, C) @ (C, TH) -> (N, TH), f32 accumulation.
    h = jnp.dot(x, w1_ref[...], preferred_element_type=jnp.float32)

    # Training-mode BatchNorm1d, biased batch stats, one pass over the tile.
    inv_n = 1.0 / n
    s1 = jnp.sum(h, axis=0, keepdims=True)
    s2 = jnp.sum(h * h, axis=0, keepdims=True)
    mu = s1 * inv_n
    var = jnp.maximum(s2 * inv_n - mu * mu, 0.0)
    bn = bn_ref[...]                                      # (2, TH): [gamma; beta], f32
    scale = bn[0:1, :] * jax.lax.rsqrt(var + EPS_BN)      # gamma * rsqrt(var + eps)
    shift = bn[1:2, :] - mu * scale                       # beta - mu * scale
    h = jnp.maximum(h * scale + shift, 0.0)               # folded BN affine + ReLU

    # fc2 partial contribution for this hidden tile, accumulated across the grid.
    o_ref[...] += jnp.dot(h.astype(w2_ref.dtype), w2_ref[...],
                          preferred_element_type=jnp.float32)[None]


def nonlinear_neck_v2(xs, params, *, hid_tile=512, core_splits=1,
                      stream_dtype=jnp.bfloat16):
    """xs: list with one (N, C, H, W) tensor (as the PyTorch module expects).
    params: w1 (hid, C), b1/g1/be1 (hid,), w2 (out, hid), b2 (out,).
    core_splits: set to 2 on v7x (2 TensorCores); keep 1 on v5e/v6e.
    Returns [out] with out: (N, out)."""
    assert len(xs) == 1, f"Got: {len(xs)}"
    x_nchw = xs[0]
    N, C, H, W = x_nchw.shape
    hid = params["w1"].shape[0]
    out = params["w2"].shape[0]
    f32 = jnp.float32

    # AdaptiveAvgPool2d((1,1)) + flatten, done in the wrapper (XLA fuses it).
    x = jnp.mean(x_nchw.astype(f32).reshape(N, C, H * W), axis=-1).astype(stream_dtype)

    # Lane-dense tiling/padding of the hidden and output dims.
    th = min(_round_up(hid_tile, LANE), _round_up(hid, LANE))
    if core_splits > 1:
        th = min(th, _round_up(_cdiv(hid, core_splits), LANE))
    n_tiles = _round_up(_cdiv(hid, th), core_splits)      # total tiles, split-divisible
    tiles_per_split = n_tiles // core_splits
    hid_p = n_tiles * th
    out_p = _round_up(out, LANE)

    # fc1 weight -> per-tile contiguous (n_tiles, C, th) slab (x @ W1^T layout).
    w1_p = jnp.zeros((hid_p, C), f32).at[:hid].set(params["w1"].astype(f32))
    w1t = w1_p.reshape(n_tiles, th, C).transpose(0, 2, 1).astype(stream_dtype)

    # BN affine packed per tile: (n_tiles, 2, th) = [gamma; beta].  fc1 bias is
    # dropped: a per-channel constant is cancelled by the BN batch-mean subtraction.
    bn = jnp.zeros((2, hid_p), f32)
    bn = bn.at[0, :hid].set(params["g1"].astype(f32))
    bn = bn.at[1, :hid].set(params["be1"].astype(f32))
    bn = bn.reshape(2, n_tiles, th).transpose(1, 0, 2)

    # fc2 weight -> (hid_p, out_p); padded hidden rows are zero (exact zero contrib).
    w2t = jnp.zeros((hid_p, out_p), f32).at[:hid, :out].set(params["w2"].astype(f32).T)
    w2t = w2t.astype(stream_dtype)

    # VMEM budget: resident x + output block, double-buffered weight/BN tiles.
    sb = jnp.dtype(stream_dtype).itemsize
    vmem_bytes = (2 * N * C * sb            # pooled x (resident, conservatively x2)
                  + 2 * C * th * sb         # W1 tile, double-buffered
                  + 2 * 2 * th * 4          # BN slab, double-buffered
                  + 2 * th * out_p * sb     # W2 tile, double-buffered
                  + 2 * N * out_p * 4)      # f32 output partial block
    vmem_limit = _vmem_limit(vmem_bytes)

    tps = tiles_per_split
    partials = pl.pallas_call(
        _neck_kernel,
        out_shape=jax.ShapeDtypeStruct((core_splits, N, out_p), f32),
        grid_spec=pltpu.PrefetchScalarGridSpec(
            num_scalar_prefetch=0,
            grid=(core_splits, tiles_per_split),
            in_specs=[
                pl.BlockSpec((N, C), lambda s, j: (0, 0)),                 # pooled x
                pl.BlockSpec((pl.Squeezed(), C, th),                       # W1 tile
                             lambda s, j, t=tps: (s * t + j, 0, 0)),
                pl.BlockSpec((pl.Squeezed(), 2, th),                       # [gamma; beta]
                             lambda s, j, t=tps: (s * t + j, 0, 0)),
                pl.BlockSpec((th, out_p),                                  # W2 tile
                             lambda s, j, t=tps: (s * t + j, 0)),
            ],
            out_specs=pl.BlockSpec((1, N, out_p), lambda s, j: (s, 0, 0)),
        ),
        compiler_params=pltpu.CompilerParams(
            dimension_semantics=("parallel", "arbitrary"),
            vmem_limit_bytes=vmem_limit,
        ),
    )(x, w1t, bn, w2t)

    # Sum per-split partials, slice off lane padding, fold the fc2 bias here.
    y = partials.sum(axis=0)[:, :out] + params["b2"].astype(f32)[None, :]
    return [y]


def _reference(xs, p):
    """Pure-JAX reference of the PyTorch forward (fc-bn-relu-fc, train-mode BN)."""
    x = jnp.mean(xs[0], axis=(2, 3))
    hi = jax.lax.Precision.HIGHEST
    h = jnp.dot(x, p["w1"].T, precision=hi) + p["b1"]
    mu = h.mean(0, keepdims=True)
    var = ((h - mu) ** 2).mean(0, keepdims=True)
    h = (h - mu) / jnp.sqrt(var + EPS_BN) * p["g1"] + p["be1"]
    h = jax.nn.relu(h)
    return jnp.dot(h, p["w2"].T, precision=hi) + p["b2"]


if __name__ == "__main__":
    key = jax.random.PRNGKey(0)
    N, C, H, W = 16, 64, 8, 8        # batch, in_channels, spatial
    HID, OUT = 512, 64               # hid_channels, out_channels
    ks = jax.random.split(key, 7)

    x = jax.random.normal(ks[0], (N, C, H, W), jnp.float32)
    # Linear weights ~ normal(std=0.01) as in _init_weights; biases / BN affine
    # given small random values to exercise those code paths.
    params = dict(
        w1=0.01 * jax.random.normal(ks[1], (HID, C), jnp.float32),
        b1=0.1 * jax.random.normal(ks[2], (HID,), jnp.float32),
        g1=1.0 + 0.1 * jax.random.normal(ks[3], (HID,), jnp.float32),
        be1=0.1 * jax.random.normal(ks[4], (HID,), jnp.float32),
        w2=0.01 * jax.random.normal(ks[5], (OUT, HID), jnp.float32),
        b2=0.1 * jax.random.normal(ks[6], (OUT,), jnp.float32),
    )

    ref = _reference([x], params)

    # (hid_tile, core_splits, stream_dtype, atol/rtol):
    #  - f32 single-step config checks the restructured math at tight tolerance,
    #  - bf16 configs (default streaming dtype) use a tolerance consistent with
    #    bf16 weight/activation streaming,
    #  - multi-tile and 2-split configs exercise the accumulate + parallel paths.
    configs = [
        (512, 1, jnp.float32, 2e-3),
        (512, 1, jnp.bfloat16, 1e-2),
        (256, 1, jnp.bfloat16, 1e-2),
        (256, 2, jnp.bfloat16, 1e-2),
    ]
    for hid_tile, splits, sdt, tol in configs:
        out = nonlinear_neck_v2([x], params, hid_tile=hid_tile,
                                core_splits=splits, stream_dtype=sdt)[0]
        jax.block_until_ready(out)
        assert out.shape == (N, OUT)
        max_err = float(jnp.max(jnp.abs(out - ref)))
        assert jnp.allclose(out, ref, atol=tol, rtol=tol), (
            f"Pallas output mismatch vs JAX reference "
            f"(hid_tile={hid_tile}, splits={splits}, dtype={sdt}, "
            f"max abs err {max_err})")

    print("KERNEL_OK")
</pallas_src>

<mosaic_0001>
module attributes {stable_mosaic.version = 11 : i64} {
  func.func @_neck_kernel(%arg0: i32, %arg1: i32, %arg2: memref<16x64xf32, #tpu.memory_space<vmem>>, %arg3: memref<1x64x512xf32, #tpu.memory_space<vmem>>, %arg4: memref<1x2x512xf32, #tpu.memory_space<vmem>>, %arg5: memref<512x128xf32, #tpu.memory_space<vmem>>, %arg6: memref<1x16x128xf32, #tpu.memory_space<vmem>>) attributes {dimension_semantics = [#tpu.dimension_semantics<parallel>, #tpu.dimension_semantics<arbitrary>], iteration_bounds = array<i64: 1, 1>, scalar_prefetch = 0 : i64, scratch_operands = 0 : i64, tpu.core_type = #tpu.core_type<tc>, window_params = [{pipeline_mode = #tpu.pipeline_mode<synchronous>, transform_indices = @transform_0, window_bounds = array<i64: 16, 64>}, {transform_indices = @transform_1, window_bounds = array<i64: 1, 64, 512>}, {transform_indices = @transform_2, window_bounds = array<i64: 1, 2, 512>}, {transform_indices = @transform_3, window_bounds = array<i64: 512, 128>}, {transform_indices = @transform_4, window_bounds = array<i64: 1, 16, 128>}]} {
    %c0_i32 = arith.constant 0 : i32
    %0 = arith.cmpi eq, %arg1, %c0_i32 : i32
    %1 = arith.extui %0 : i1 to i32
    %c0_i32_0 = arith.constant 0 : i32
    %2 = arith.cmpi ne, %1, %c0_i32_0 : i32
    scf.if %2 {
      %cst_24 = arith.constant 0.000000e+00 : f32
      %42 = vector.broadcast %cst_24 : f32 to vector<1x16x128xf32>
      %c0_25 = arith.constant 0 : index
      %c0_26 = arith.constant 0 : index
      %c0_27 = arith.constant 0 : index
      %43 = vector.load %arg6[%c0_25, %c0_26, %c0_27] : memref<1x16x128xf32, #tpu.memory_space<vmem>>, vector<1x16x128xf32>
      tpu.vector_store %arg6[%c0_25, %c0_26, %c0_27], %42 {strides = array<i32>} : memref<1x16x128xf32, #tpu.memory_space<vmem>>, vector<1x16x128xf32>,
    } else {
    }
    %c0 = arith.constant 0 : index
    %c0_1 = arith.constant 0 : index
    %3 = vector.load %arg2[%c0, %c0_1] : memref<16x64xf32, #tpu.memory_space<vmem>>, vector<16x64xf32>
    %c0_2 = arith.constant 0 : index
    %c0_3 = arith.constant 0 : index
    %c0_4 = arith.constant 0 : index
    %4 = vector.load %arg3[%c0_2, %c0_3, %c0_4] : memref<1x64x512xf32, #tpu.memory_space<vmem>>, vector<1x64x512xf32>
    %5 = vector.shape_cast %4 : vector<1x64x512xf32> to vector<64x512xf32>
    %cst = arith.constant dense<0.000000e+00> : vector<16x512xf32>
    %6 = tpu.matmul %3, %5, %cst {dimension_numbers = #tpu.dot_dimension_numbers<[1], [0], [0], [1], [0, 0, 1, 1], [], []>} : vector<16x64xf32>, vector<64x512xf32>, vector<16x512xf32> -> vector<16x512xf32>
    %cst_5 = arith.constant dense<0.000000e+00> : vector<512xf32>
    %7 = vector.multi_reduction <add>, %6, %cst_5 [0] : vector<16x512xf32> to vector<512xf32>
    %8 = vector.shape_cast %7 : vector<512xf32> to vector<1x512xf32>
    %9 = arith.mulf %6, %6 : vector<16x512xf32>
    %cst_6 = arith.constant dense<0.000000e+00> : vector<512xf32>
    %10 = vector.multi_reduction <add>, %9, %cst_6 [0] : vector<16x512xf32> to vector<512xf32>
    %11 = vector.shape_cast %10 : vector<512xf32> to vector<1x512xf32>
    %cst_7 = arith.constant 6.250000e-02 : f32
    %12 = vector.broadcast %cst_7 : f32 to vector<1x512xf32>
    %13 = arith.mulf %8, %12 : vector<1x512xf32>
    %cst_8 = arith.constant 6.250000e-02 : f32
    %14 = vector.broadcast %cst_8 : f32 to vector<1x512xf32>
    %15 = arith.mulf %11, %14 : vector<1x512xf32>
    %16 = arith.mulf %13, %13 : vector<1x512xf32>
    %17 = arith.subf %15, %16 : vector<1x512xf32>
    %cst_9 = arith.constant 0.000000e+00 : f32
    %18 = vector.broadcast %cst_9 : f32 to vector<1x512xf32>
    %19 = arith.maximumf %17, %18 : vector<1x512xf32>
    %c0_10 = arith.constant 0 : index
    %c0_11 = arith.constant 0 : index
    %c0_12 = arith.constant 0 : index
    %20 = vector.load %arg4[%c0_10, %c0_11, %c0_12] : memref<1x2x512xf32, #tpu.memory_space<vmem>>, vector<1x2x512xf32>
    %21 = vector.shape_cast %20 : vector<1x2x512xf32> to vector<2x512xf32>
    %22 = vector.extract_strided_slice %21 {offsets = [0, 0], sizes = [1, 512], strides = [1, 1]} : vector<2x512xf32> to vector<1x512xf32>
    %cst_13 = arith.constant 9.99999974E-6 : f32
    %23 = vector.broadcast %cst_13 : f32 to vector<1x512xf32>
    %24 = arith.addf %19, %23 : vector<1x512xf32>
    %25 = math.rsqrt %24 : vector<1x512xf32>
    %26 = arith.mulf %22, %25 : vector<1x512xf32>
    %27 = vector.extract_strided_slice %21 {offsets = [1, 0], sizes = [1, 512], strides = [1, 1]} : vector<2x512xf32> to vector<1x512xf32>
    %28 = arith.mulf %13, %26 : vector<1x512xf32>
    %29 = arith.subf %27, %28 : vector<1x512xf32>
    %30 = vector.broadcast %26 : vector<1x512xf32> to vector<16x512xf32>
    %31 = arith.mulf %6, %30 : vector<16x512xf32>
    %32 = vector.broadcast %29 : vector<1x512xf32> to vector<16x512xf32>
    %33 = arith.addf %31, %32 : vector<16x512xf32>
    %cst_14 = arith.constant 0.000000e+00 : f32
    %34 = vector.broadcast %cst_14 : f32 to vector<16x512xf32>
    %35 = arith.maximumf %33, %34 : vector<16x512xf32>
    %c0_15 = arith.constant 0 : index
    %c0_16 = arith.constant 0 : index
    %c0_17 = arith.constant 0 : index
    %36 = vector.load %arg6[%c0_15, %c0_16, %c0_17] : memref<1x16x128xf32, #tpu.memory_space<vmem>>, vector<1x16x128xf32>
    %c0_18 = arith.constant 0 : index
    %c0_19 = arith.constant 0 : index
    %37 = vector.load %arg5[%c0_18, %c0_19] : memref<512x128xf32, #tpu.memory_space<vmem>>, vector<512x128xf32>
    %cst_20 = arith.constant dense<0.000000e+00> : vector<16x128xf32>
    %38 = tpu.matmul %35, %37, %cst_20 {dimension_numbers = #tpu.dot_dimension_numbers<[1], [0], [0], [1], [0, 0, 1, 1], [], []>} : vector<16x512xf32>, vector<512x128xf32>, vector<16x128xf32> -> vector<16x128xf32>
    %39 = vector.shape_cast %38 : vector<16x128xf32> to vector<1x16x128xf32>
    %40 = arith.addf %36, %39 : vector<1x16x128xf32>
    %c0_21 = arith.constant 0 : index
    %c0_22 = arith.constant 0 : index
    %c0_23 = arith.constant 0 : index
    %41 = vector.load %arg6[%c0_21, %c0_22, %c0_23] : memref<1x16x128xf32, #tpu.memory_space<vmem>>, vector<1x16x128xf32>
    tpu.vector_store %arg6[%c0_21, %c0_22, %c0_23], %40 {strides = array<i32>} : memref<1x16x128xf32, #tpu.memory_space<vmem>>, vector<1x16x128xf32>,
    return
  }
  func.func @transform_0(%arg0: i32, %arg1: i32) -> (i32, i32) {
    %c0_i32 = arith.constant 0 : i32
    %c0_i32_0 = arith.constant 0 : i32
    %c0_i32_1 = arith.constant 0 : i32
    return %c0_i32, %c0_i32_0 : i32, i32
  }
  func.func @transform_1(%arg0: i32, %arg1: i32) -> (i32, i32, i32) {
    %c1_i32 = arith.constant 1 : i32
    %0 = arith.muli %arg0, %c1_i32 : i32
    %1 = arith.addi %0, %arg1 : i32
    %c0_i32 = arith.constant 0 : i32
    %c0_i32_0 = arith.constant 0 : i32
    %c0_i32_1 = arith.constant 0 : i32
    return %1, %c0_i32, %c0_i32_0 : i32, i32, i32
  }
  func.func @transform_2(%arg0: i32, %arg1: i32) -> (i32, i32, i32) {
    %c1_i32 = arith.constant 1 : i32
    %0 = arith.muli %arg0, %c1_i32 : i32
    %1 = arith.addi %0, %arg1 : i32
    %c0_i32 = arith.constant 0 : i32
    %c0_i32_0 = arith.constant 0 : i32
    %c0_i32_1 = arith.constant 0 : i32
    return %1, %c0_i32, %c0_i32_0 : i32, i32, i32
  }
  func.func @transform_3(%arg0: i32, %arg1: i32) -> (i32, i32) {
    %c1_i32 = arith.constant 1 : i32
    %0 = arith.muli %arg0, %c1_i32 : i32
    %1 = arith.addi %0, %arg1 : i32
    %c0_i32 = arith.constant 0 : i32
    %c0_i32_0 = arith.constant 0 : i32
    return %1, %c0_i32 : i32, i32
  }
  func.func @transform_4(%arg0: i32, %arg1: i32) -> (i32, i32, i32) {
    %c0_i32 = arith.constant 0 : i32
    %c0_i32_0 = arith.constant 0 : i32
    %c0_i32_1 = arith.constant 0 : i32
    return %arg0, %c0_i32, %c0_i32_0 : i32, i32, i32
  }
}

</mosaic_0001>

<llo_original>
// kernel: tpu_custom_call.1
$region0: #{tpu_custom_call.1}
  #allocation0 [shape = 'u32[]', space=smem, size = 0x4, offset = 0x4, fixed_abs, tag = 'smem constant byte address 0x4 - core index']
  #allocation1 [shape = 'u32[72,128]{1,0:T(1,128)}', space=vmem, size = 0x9000, scoped, tag = 'internal scratch']
  %s0 = inlined_call_operand.hbm [shape: f32[16,64], index: 0, kind: input, shape index: {}]
  %s1 = inlined_call_operand.hbm [shape: f32[1,64,512], index: 1, kind: input, shape index: {}]
  %s2 = inlined_call_operand.hbm [shape: f32[1,2,512], index: 2, kind: input, shape index: {}]
  %s3 = inlined_call_operand.hbm [shape: f32[512,128], index: 3, kind: input, shape index: {}]
  %s4 = inlined_call_operand.hbm [shape: f32[1,16,128], index: 4, kind: output, shape index: {}]
  %s5 = sld [smem:[#allocation0]]
  $region46: #{tpu_custom_call.1} parent=0
    _
  %s7 = ssub.s32 1, %s5
  %s8 = scalar_select 0, %s7, %s5
  $region1: #{tpu_custom_call.1} parent=0
    #allocation2 [shape = 'u8[8192]{0}', space=vmem, size = 0x2000, scoped, tag = 'input window, operand 0, single buffered']
    #allocation3 [shape = 's32[1]{0}', space=sflag, size = 0x4, scoped, tag = 'scoped memory for tpu_custom_call.1']
    #allocation4 [shape = 's32[1]{0}', space=sflag, size = 0x4, scoped, tag = 'scoped memory for tpu_custom_call.1']
    #allocation5 [shape = 'u8[131072]{0}', space=vmem, size = 0x20000, scoped, tag = 'input window, operand 1, single buffered']
    #allocation6 [shape = 's32[1]{0}', space=sflag, size = 0x4, scoped, tag = 'scoped memory for tpu_custom_call.1']
    #allocation7 [shape = 'u8[4096]{0}', space=vmem, size = 0x1000, scoped, tag = 'input window, operand 2, single buffered']
    #allocation8 [shape = 'u8[262144]{0}', space=vmem, size = 0x40000, scoped, tag = 'input window, operand 3, single buffered']
    #allocation9 [shape = 's32[1]{0}', space=sflag, size = 0x4, scoped, tag = 'scoped memory for tpu_custom_call.1']
    #allocation10 [shape = 'u8[8192]{0}', space=vmem, size = 0x2000, scoped, tag = 'output window, operand 0, single buffered']
    %9 = vsyncpa [#allocation3], 0
    %10 = vsyncpa [#allocation6], 0
    %11 = vsyncpa [#allocation9], 0
    %12 = vsyncpa [#allocation4], 0
    // Predicated region
    $region2: #{tpu_custom_call.1} parent=1 // pred_check
      _
    $region3: #{tpu_custom_call.1} parent=1 // pred_check_branch
      %14 = sbr.rel (0) target = $region5
    $region4: #{tpu_custom_call.1} parent=1 // pred_region
      %16 = vsyncadd [#allocation3], 0
      %s17 = sshll.u32 %s0, 4
      %s18 = int_to_ptr.hbm [resolvable:$true] %s17
      %s19 = sshll.u32 [#allocation2], 4
      %s20 = int_to_ptr.vmem [resolvable:$true] %s19
      %25 = dma.hbm_to_vmem [thread:$0]  %s18, 256, %s20, [#allocation3], 128, 128, 8
    $region5: #{tpu_custom_call.1} parent=1 // pred_fallthru
      _
    // Predicated region
    $region6: #{tpu_custom_call.1} parent=1 // pred_check
      _
    $region7: #{tpu_custom_call.1} parent=1 // pred_check_branch
      %27 = sbr.rel (0) target = $region9
    $region8: #{tpu_custom_call.1} parent=1 // pred_region
      %s28 = sadd.s32 0, 0
      %30 = vsyncadd [#allocation6], 0
      %s31 = smul.addr %s28, 32
      %s32 = smul.addr %s31, 8
      %s33 = scalar_lea.hbm %s1, %s32
      %s34 = sshll.u32 %s33, 4
      %s35 = int_to_ptr.hbm [resolvable:$true] %s34
      %s36 = sshll.u32 [#allocation5], 4
      %s37 = int_to_ptr.vmem [resolvable:$true] %s36
      %42 = dma.hbm_to_vmem [thread:$0]  %s35, 4096, %s37, [#allocation6], 512, 512, 32
    $region9: #{tpu_custom_call.1} parent=1 // pred_fallthru
      _
    // Predicated region
    $region10: #{tpu_custom_call.1} parent=1 // pred_check
      _
    $region11: #{tpu_custom_call.1} parent=1 // pred_check_branch
      %44 = sbr.rel (0) target = $region13
    $region12: #{tpu_custom_call.1} parent=1 // pred_region
      %s45 = sadd.s32 0, 0
      %47 = vsyncadd [#allocation6], 0
      %s48 = smul.addr %s45, 4
      %s49 = smul.addr %s48, 2
      %s50 = scalar_lea.hbm %s2, %s49
      %s52 = sshll.u32 %s50, 4
      %s53 = int_to_ptr.hbm [resolvable:$true] %s52
      %s54 = sshll.u32 [#allocation7], 4
      %s55 = int_to_ptr.vmem [resolvable:$true] %s54
      %57 = dma.hbm_to_vmem [thread:$0]  %s53, 128, %s55, [#allocation6]
    $region13: #{tpu_custom_call.1} parent=1 // pred_fallthru
      _
    // Predicated region
    $region14: #{tpu_custom_call.1} parent=1 // pred_check
      _
    $region15: #{tpu_custom_call.1} parent=1 // pred_check_branch
      %59 = sbr.rel (0) target = $region17
    $region16: #{tpu_custom_call.1} parent=1 // pred_region
      %s60 = sadd.s32 0, 0
      %s61 = smul.u32 64, %s60
      %63 = vsyncadd [#allocation9], 0
      %s64 = smul.addr %s61, 8
      %s65 = scalar_lea.hbm %s3, %s64
      %s66 = sshll.u32 %s65, 4
      %s67 = int_to_ptr.hbm [resolvable:$true] %s66
      %s68 = sshll.u32 [#allocation8], 4
      %s69 = int_to_ptr.vmem [resolvable:$true] %s68
      %74 = dma.hbm_to_vmem [thread:$0]  %s67, 8192, %s69, [#allocation9], 128, 128, 8
    $region17: #{tpu_custom_call.1} parent=1 // pred_fallthru
      _
    // Predicated region
    $region18: #{tpu_custom_call.1} parent=1 // pred_check
      _
    $region19: #{tpu_custom_call.1} parent=1 // pred_check_branch
      %76 = sbr.rel (0) target = $region21
    $region20: #{tpu_custom_call.1} parent=1 // pred_region
      %78 = dma.done [#allocation3], 256
    $region21: #{tpu_custom_call.1} parent=1 // pred_fallthru
      _
    // Predicated region
    $region22: #{tpu_custom_call.1} parent=1 // pred_check
      _
    $region23: #{tpu_custom_call.1} parent=1 // pred_check_branch
      %80 = sbr.rel (0) target = $region25
    $region24: #{tpu_custom_call.1} parent=1 // pred_region
      %82 = dma.done [#allocation6], 4096
    $region25: #{tpu_custom_call.1} parent=1 // pred_fallthru
      _
    // Predicated region
    $region26: #{tpu_custom_call.1} parent=1 // pred_check
      _
    $region27: #{tpu_custom_call.1} parent=1 // pred_check_branch
      %84 = sbr.rel (0) target = $region29
    $region28: #{tpu_custom_call.1} parent=1 // pred_region
      %86 = dma.done [#allocation6], 128
    $region29: #{tpu_custom_call.1} parent=1 // pred_fallthru
      _
    // Predicated region
    $region30: #{tpu_custom_call.1} parent=1 // pred_check
      _
    $region31: #{tpu_custom_call.1} parent=1 // pred_check_branch
      %88 = sbr.rel (0) target = $region33
    $region32: #{tpu_custom_call.1} parent=1 // pred_region
      %90 = dma.done [#allocation9], 8192
    $region33: #{tpu_custom_call.1} parent=1 // pred_fallthru
      _
    %s91 = sadd.s32 0, 0
    %s92 = sadd.s32 0, 0
    %s93 = sadd.s32 0, 0
    %s94 = smul.u32 64, %s93
    %p95 = scmp.eq.s32.totalorder 0, 0
    // Predicated region
    $region34: #{tpu_custom_call.1} parent=1 // pred_check
      %p96 = pneg %p95
    $region35: #{tpu_custom_call.1} parent=1 // pred_check_branch
      %98 = sbr.rel (%p96) target = $region37
    $region36: #{tpu_custom_call.1} parent=1 // pred_region
      %99 = vst [vmem:[#allocation10] sm:$0xff] 0.0
      %100 = vst [vmem:[#allocation10 + $0x8] sm:$0xff] 0.0
    $region37: #{tpu_custom_call.1} parent=1 // pred_fallthru
      _
    %v101 = vld [vmem:[#allocation2] sm:$0xff]
    %v102 = vld [vmem:[#allocation2 + $0x8] sm:$0xff]
    %v103 = vld [vmem:[#allocation5] sm:$0xff]
    %v104 = vld [vmem:[#allocation5 + $0x8] sm:$0xff]
    %v105 = vld [vmem:[#allocation5 + $0x10] sm:$0xff]
    %v106 = vld [vmem:[#allocation5 + $0x18] sm:$0xff]
    %v107 = vld [vmem:[#allocation5 + $0x20] sm:$0xff]
    %v108 = vld [vmem:[#allocation5 + $0x28] sm:$0xff]
    %v109 = vld [vmem:[#allocation5 + $0x30] sm:$0xff]
    %v110 = vld [vmem:[#allocation5 + $0x38] sm:$0xff]
    %v111 = vld [vmem:[#allocation5 + $0x40] sm:$0xff]
    %v112 = vld [vmem:[#allocation5 + $0x48] sm:$0xff]
    %v113 = vld [vmem:[#allocation5 + $0x50] sm:$0xff]
    %v114 = vld [vmem:[#allocation5 + $0x58] sm:$0xff]
    %v115 = vld [vmem:[#allocation5 + $0x60] sm:$0xff]
    %v116 = vld [vmem:[#allocation5 + $0x68] sm:$0xff]
    %v117 = vld [vmem:[#allocation5 + $0x70] sm:$0xff]
    %v118 = vld [vmem:[#allocation5 + $0x78] sm:$0xff]
    %v119 = vld [vmem:[#allocation5 + $0x80] sm:$0xff]
    %v120 = vld [vmem:[#allocation5 + $0x88] sm:$0xff]
    %v121 = vld [vmem:[#allocation5 + $0x90] sm:$0xff]
    %v122 = vld [vmem:[#allocation5 + $0x98] sm:$0xff]
    %v123 = vld [vmem:[#allocation5 + $0xa0] sm:$0xff]
    %v124 = vld [vmem:[#allocation5 + $0xa8] sm:$0xff]
    %v125 = vld [vmem:[#allocation5 + $0xb0] sm:$0xff]
    %v126 = vld [vmem:[#allocation5 + $0xb8] sm:$0xff]
    %v127 = vld [vmem:[#allocation5 + $0xc0] sm:$0xff]
    %v128 = vld [vmem:[#allocation5 + $0xc8] sm:$0xff]
    %v129 = vld [vmem:[#allocation5 + $0xd0] sm:$0xff]
    %v130 = vld [vmem:[#allocation5 + $0xd8] sm:$0xff]
    %v131 = vld [vmem:[#allocation5 + $0xe0] sm:$0xff]
    %v132 = vld [vmem:[#allocation5 + $0xe8] sm:$0xff]
    %v133 = vld [vmem:[#allocation5 + $0xf0] sm:$0xff]
    %v134 = vld [vmem:[#allocation5 + $0xf8] sm:$0xff]
    %vm135 = vcmask 523264
    %v137 = vsel %vm135, %v101, 0
    %v140 = vsel %vm135, %v102, 0
    %142 = vmatpush.msra.mxu0 0.0
    %143 = vmatpush.msra.mxu0 0.0
    %144 = vmatpush.msra.mxu0 0.0
    %145 = vmatpush.msra.mxu0 0.0
    %146 = vmatpush.msra.mxu0 0.0
    %147 = vmatpush.msra.mxu0 0.0
    %148 = vmatpush.msra.mxu0 0.0
    %149 = vmatpush.msra.mxu0 0.0
    %150 = vmatpush.msra.mxu0 %v131
    %151 = vmatpush.msra.mxu0 %v127
    %152 = vmatpush.msra.mxu0 %v123
    %153 = vmatpush.msra.mxu0 %v119
    %154 = vmatpush.msra.mxu0 %v115
    %155 = vmatpush.msra.mxu0 %v111
    %156 = vmatpush.msra.mxu0 %v107
    %157 = vmatpush.msra.mxu0 %v103
    %158 = vmatmul.f32.gmra.mxu0 %v137
    %v159 = vpop.f32.mrf.mxu0
    %v160 = vadd.f32 0.0, %v159
    %161 = vmatmul.f32.gmra.mxu0 %v140
    %v162 = vpop.f32.mrf.mxu0
    %v163 = vadd.f32 0.0, %v162
    %164 = vdwg.mxu0
    %165 = vmatpush.msra.mxu0 0.0
    %166 = vmatpush.msra.mxu0 0.0
    %167 = vmatpush.msra.mxu0 0.0
    %168 = vmatpush.msra.mxu0 0.0
    %169 = vmatpush.msra.mxu0 0.0
    %170 = vmatpush.msra.mxu0 0.0
    %171 = vmatpush.msra.mxu0 0.0
    %172 = vmatpush.msra.mxu0 0.0
    %173 = vmatpush.msra.mxu0 %v132
    %174 = vmatpush.msra.mxu0 %v128
    %175 = vmatpush.msra.mxu0 %v124
    %176 = vmatpush.msra.mxu0 %v120
    %177 = vmatpush.msra.mxu0 %v116
    %178 = vmatpush.msra.mxu0 %v112
    %179 = vmatpush.msra.mxu0 %v108
    %180 = vmatpush.msra.mxu0 %v104
    %181 = vmatmul.f32.gmra.mxu0 %v137
    %v182 = vpop.f32.mrf.mxu0
    %v183 = vadd.f32 0.0, %v182
    %184 = vmatmul.f32.gmra.mxu0 %v140
    %v185 = vpop.f32.mrf.mxu0
    %v186 = vadd.f32 0.0, %v185
    %187 = vdwg.mxu0
    %188 = vmatpush.msra.mxu0 0.0
    %189 = vmatpush.msra.mxu0 0.0
    %190 = vmatpush.msra.mxu0 0.0
    %191 = vmatpush.msra.mxu0 0.0
    %192 = vmatpush.msra.mxu0 0.0
    %193 = vmatpush.msra.mxu0 0.0
    %194 = vmatpush.msra.mxu0 0.0
    %195 = vmatpush.msra.mxu0 0.0
    %196 = vmatpush.msra.mxu0 %v133
    %197 = vmatpush.msra.mxu0 %v129
    %198 = vmatpush.msra.mxu0 %v125
    %199 = vmatpush.msra.mxu0 %v121
    %200 = vmatpush.msra.mxu0 %v117
    %201 = vmatpush.msra.mxu0 %v113
    %202 = vmatpush.msra.mxu0 %v109
    %203 = vmatpush.msra.mxu0 %v105
    %204 = vmatmul.f32.gmra.mxu0 %v137
    %v205 = vpop.f32.mrf.mxu0
    %v206 = vadd.f32 0.0, %v205
    %207 = vmatmul.f32.gmra.mxu0 %v140
    %v208 = vpop.f32.mrf.mxu0
    %v209 = vadd.f32 0.0, %v208
    %210 = vdwg.mxu0
    %211 = vmatpush.msra.mxu0 0.0
    %212 = vmatpush.msra.mxu0 0.0
    %213 = vmatpush.msra.mxu0 0.0
    %214 = vmatpush.msra.mxu0 0.0
    %215 = vmatpush.msra.mxu0 0.0
    %216 = vmatpush.msra.mxu0 0.0
    %217 = vmatpush.msra.mxu0 0.0
    %218 = vmatpush.msra.mxu0 0.0
    %219 = vmatpush.msra.mxu0 %v134
    %220 = vmatpush.msra.mxu0 %v130
    %221 = vmatpush.msra.mxu0 %v126
    %222 = vmatpush.msra.mxu0 %v122
    %223 = vmatpush.msra.mxu0 %v118
    %224 = vmatpush.msra.mxu0 %v114
    %225 = vmatpush.msra.mxu0 %v110
    %226 = vmatpush.msra.mxu0 %v106
    %227 = vmatmul.f32.gmra.mxu0 %v137
    %v228 = vpop.f32.mrf.mxu0
    %v229 = vadd.f32 0.0, %v228
    %230 = vmatmul.f32.gmra.mxu0 %v140
    %v231 = vpop.f32.mrf.mxu0
    %v232 = vadd.f32 0.0, %v231
    %233 = vdwg.mxu0
    %v234 = vadd.f32 %v160, %v163
    %v235 = vrot.slane %v234, 4
    %v236 = vadd.f32 %v234, %v235
    %v237 = vrot.slane %v236, 2
    %v238 = vadd.f32 %v236, %v237
    %v239 = vrot.slane %v238, 1
    %v240 = vadd.f32 %v238, %v239
    %v241 = vadd.f32 %v183, %v186
    %v242 = vrot.slane %v241, 4
    %v243 = vadd.f32 %v241, %v242
    %v244 = vrot.slane %v243, 2
    %v245 = vadd.f32 %v243, %v244
    %v246 = vrot.slane %v245, 1
    %v247 = vadd.f32 %v245, %v246
    %v248 = vadd.f32 %v206, %v209
    %v249 = vrot.slane %v248, 4
    %v250 = vadd.f32 %v248, %v249
    %v251 = vrot.slane %v250, 2
    %v252 = vadd.f32 %v250, %v251
    %v253 = vrot.slane %v252, 1
    %v254 = vadd.f32 %v252, %v253
    %v255 = vadd.f32 %v229, %v232
    %v256 = vrot.slane %v255, 4
    %v257 = vadd.f32 %v255, %v256
    %v258 = vrot.slane %v257, 2
    %v259 = vadd.f32 %v257, %v258
    %v260 = vrot.slane %v259, 1
    %v261 = vadd.f32 %v259, %v260
    %v262 = vmul.f32 %v160, %v160
    %v263 = vmul.f32 %v183, %v183
    %v264 = vmul.f32 %v206, %v206
    %v265 = vmul.f32 %v229, %v229
    %v266 = vmul.f32 %v163, %v163
    %v267 = vmul.f32 %v186, %v186
    %v268 = vmul.f32 %v209, %v209
    %v269 = vmul.f32 %v232, %v232
    %v270 = vadd.f32 %v262, %v266
    %v271 = vrot.slane %v270, 4
    %v272 = vadd.f32 %v270, %v271
    %v273 = vrot.slane %v272, 2
    %v274 = vadd.f32 %v272, %v273
    %v275 = vrot.slane %v274, 1
    %v276 = vadd.f32 %v274, %v275
    %v277 = vadd.f32 %v263, %v267
    %v278 = vrot.slane %v277, 4
    %v279 = vadd.f32 %v277, %v278
    %v280 = vrot.slane %v279, 2
    %v281 = vadd.f32 %v279, %v280
    %v282 = vrot.slane %v281, 1
    %v283 = vadd.f32 %v281, %v282
    %v284 = vadd.f32 %v264, %v268
    %v285 = vrot.slane %v284, 4
    %v286 = vadd.f32 %v284, %v285
    %v287 = vrot.slane %v286, 2
    %v288 = vadd.f32 %v286, %v287
    %v289 = vrot.slane %v288, 1
    %v290 = vadd.f32 %v288, %v289
    %v291 = vadd.f32 %v265, %v269
    %v292 = vrot.slane %v291, 4
    %v293 = vadd.f32 %v291, %v292
    %v294 = vrot.slane %v293, 2
    %v295 = vadd.f32 %v293, %v294
    %v296 = vrot.slane %v295, 1
    %v297 = vadd.f32 %v295, %v296
    %v298 = vmul.f32 %v240, 0.0625
    %v299 = vmul.f32 %v247, 0.0625
    %v300 = vmul.f32 %v254, 0.0625
    %v301 = vmul.f32 %v261, 0.0625
    %v302 = vmul.f32 %v276, 0.0625
    %v303 = vmul.f32 %v283, 0.0625
    %v304 = vmul.f32 %v290, 0.0625
    %v305 = vmul.f32 %v297, 0.0625
    %v306 = vmul.f32 %v298, %v298
    %v307 = vmul.f32 %v299, %v299
    %v308 = vmul.f32 %v300, %v300
    %v309 = vmul.f32 %v301, %v301
    %v310 = vsub.f32 %v302, %v306
    %v311 = vsub.f32 %v303, %v307
    %v312 = vsub.f32 %v304, %v308
    %v313 = vsub.f32 %v305, %v309
    %v314 = vmax.f32 %v310, 0.0
    %v315 = vmax.f32 %v311, 0.0
    %v316 = vmax.f32 %v312, 0.0
    %v317 = vmax.f32 %v313, 0.0
    %v318 = vld [vmem:[#allocation7] sm:$0xff]
    %v319 = vadd.f32 %v314, 1e-05
    %v320 = vadd.f32 %v315, 1e-05
    %v321 = vadd.f32 %v316, 1e-05
    %v322 = vadd.f32 %v317, 1e-05
    %v323 = vrsqrt.pop %v319
    %v324 = vmul.f32 %v323, %v319
    %v325 = vmul.f32 %v324, %v323
    %v326 = vmul.f32 0.5, %v325
    %v327 = vsub.f32 1.5, %v326
    %v328 = vmul.f32 %v323, %v327
    %vm329 = vweird.f32 %v319
    %vm330 = vweird.f32 %v323
    %vm331 = vmor %vm329, %vm330
    %v332 = vsel %vm331, %v323, %v328
    %v333 = vrsqrt.pop %v320
    %v334 = vmul.f32 %v333, %v320
    %v335 = vmul.f32 %v334, %v333
    %v336 = vmul.f32 0.5, %v335
    %v337 = vsub.f32 1.5, %v336
    %v338 = vmul.f32 %v333, %v337
    %vm339 = vweird.f32 %v320
    %vm340 = vweird.f32 %v333
    %vm341 = vmor %vm339, %vm340
    %v342 = vsel %vm341, %v333, %v338
    %v343 = vrsqrt.pop %v321
    %v344 = vmul.f32 %v343, %v321
    %v345 = vmul.f32 %v344, %v343
    %v346 = vmul.f32 0.5, %v345
    %v347 = vsub.f32 1.5, %v346
    %v348 = vmul.f32 %v343, %v347
    %vm349 = vweird.f32 %v321
    %vm350 = vweird.f32 %v343
    %vm351 = vmor %vm349, %vm350
    %v352 = vsel %vm351, %v343, %v348
    %v353 = vrsqrt.pop %v322
    %v354 = vmul.f32 %v353, %v322
    %v355 = vmul.f32 %v354, %v353
    %v356 = vmul.f32 0.5, %v355
    %v357 = vsub.f32 1.5, %v356
    %v358 = vmul.f32 %v353, %v357
    %vm359 = vweird.f32 %v322
    %vm360 = vweird.f32 %v353
    %vm361 = vmor %vm359, %vm360
    %v362 = vsel %vm361, %v353, %v358
    %v367 = vrot.slane %v342, 6
    %v368 = vrot.slane %v352, 4
    %v369 = vrot.slane %v362, 2
    %vm370 = vcmask 1041408
    %v371 = vsel %vm370, %v332, %v367
    %vm372 = vcmask 1045508
    %v373 = vsel %vm372, %v368, %v369
    %vm374 = vcmask 1043456
    %v375 = vsel %vm374, %v371, %v373
    %v377 = vmul.f32 %v318, %v375
    %v379 = vperm.slane %v377, 0
    %v380 = vperm.slane %v377, 2
    %v381 = vperm.slane %v377, 4
    %v382 = vperm.slane %v377, 6
    %v387 = vmul.f32 %v298, %v379
    %v388 = vmul.f32 %v299, %v380
    %v389 = vmul.f32 %v300, %v381
    %v390 = vmul.f32 %v301, %v382
    %v395 = vrot.slane %v388, 6
    %v396 = vrot.slane %v389, 4
    %v397 = vrot.slane %v390, 2
    %v398 = vsel %vm370, %v387, %v395
    %v399 = vsel %vm372, %v396, %v397
    %v400 = vsel %vm374, %v398, %v399
    %v401 = vrot.slane %v400, 7
    %v403 = vsub.f32 %v318, %v401
    %v404 = vperm.slane %v379, 0
    %v405 = vperm.slane %v380, 0
    %v406 = vperm.slane %v381, 0
    %v407 = vperm.slane %v382, 0
    %v408 = vmul.f32 %v160, %v404
    %v409 = vmul.f32 %v183, %v405
    %v410 = vmul.f32 %v206, %v406
    %v411 = vmul.f32 %v229, %v407
    %v412 = vmul.f32 %v163, %v404
    %v413 = vmul.f32 %v186, %v405
    %v414 = vmul.f32 %v209, %v406
    %v415 = vmul.f32 %v232, %v407
    %v417 = vperm.slane %v403, 1
    %v418 = vperm.slane %v403, 3
    %v419 = vperm.slane %v403, 5
    %v420 = vperm.slane %v403, 7
    %v425 = vperm.slane %v417, 1
    %v426 = vperm.slane %v418, 1
    %v427 = vperm.slane %v419, 1
    %v428 = vperm.slane %v420, 1
    %v429 = vadd.f32 %v408, %v425
    %v430 = vadd.f32 %v409, %v426
    %v431 = vadd.f32 %v410, %v427
    %v432 = vadd.f32 %v411, %v428
    %v433 = vadd.f32 %v412, %v425
    %v434 = vadd.f32 %v413, %v426
    %v435 = vadd.f32 %v414, %v427
    %v436 = vadd.f32 %v415, %v428
    %v437 = vmax.f32 %v429, 0.0
    %v438 = vmax.f32 %v430, 0.0
    %v439 = vmax.f32 %v431, 0.0
    %v440 = vmax.f32 %v432, 0.0
    %v441 = vmax.f32 %v433, 0.0
    %v442 = vmax.f32 %v434, 0.0
    %v443 = vmax.f32 %v435, 0.0
    %v444 = vmax.f32 %v436, 0.0
    %v445 = vld [vmem:[#allocation10] sm:$0xff]
    %v446 = vld [vmem:[#allocation10 + $0x8] sm:$0xff]
    %v447 = vld [vmem:[#allocation8] sm:$0xff]
    %v448 = vld [vmem:[#allocation8 + $0x8] sm:$0xff]
    %v449 = vld [vmem:[#allocation8 + $0x10] sm:$0xff]
    %v450 = vld [vmem:[#allocation8 + $0x18] sm:$0xff]
    %v451 = vld [vmem:[#allocation8 + $0x20] sm:$0xff]
    %v452 = vld [vmem:[#allocation8 + $0x28] sm:$0xff]
    %v453 = vld [vmem:[#allocation8 + $0x30] sm:$0xff]
    %v454 = vld [vmem:[#allocation8 + $0x38] sm:$0xff]
    %v455 = vld [vmem:[#allocation8 + $0x40] sm:$0xff]
    %v456 = vld [vmem:[#allocation8 + $0x48] sm:$0xff]
    %v457 = vld [vmem:[#allocation8 + $0x50] sm:$0xff]
    %v458 = vld [vmem:[#allocation8 + $0x58] sm:$0xff]
    %v459 = vld [vmem:[#allocation8 + $0x60] sm:$0xff]
    %v460 = vld [vmem:[#allocation8 + $0x68] sm:$0xff]
    %v461 = vld [vmem:[#allocation8 + $0x70] sm:$0xff]
    %v462 = vld [vmem:[#allocation8 + $0x78] sm:$0xff]
    %v463 = vld [vmem:[#allocation8 + $0x80] sm:$0xff]
    %v464 = vld [vmem:[#allocation8 + $0x88] sm:$0xff]
    %v465 = vld [vmem:[#allocation8 + $0x90] sm:$0xff]
    %v466 = vld [vmem:[#allocation8 + $0x98] sm:$0xff]
    %v467 = vld [vmem:[#allocation8 + $0xa0] sm:$0xff]
    %v468 = vld [vmem:[#allocation8 + $0xa8] sm:$0xff]
    %v469 = vld [vmem:[#allocation8 + $0xb0] sm:$0xff]
    %v470 = vld [vmem:[#allocation8 + $0xb8] sm:$0xff]
    %v471 = vld [vmem:[#allocation8 + $0xc0] sm:$0xff]
    %v472 = vld [vmem:[#allocation8 + $0xc8] sm:$0xff]
    %v473 = vld [vmem:[#allocation8 + $0xd0] sm:$0xff]
    %v474 = vld [vmem:[#allocation8 + $0xd8] sm:$0xff]
    %v475 = vld [vmem:[#allocation8 + $0xe0] sm:$0xff]
    %v476 = vld [vmem:[#allocation8 + $0xe8] sm:$0xff]
    %v477 = vld [vmem:[#allocation8 + $0xf0] sm:$0xff]
    %v478 = vld [vmem:[#allocation8 + $0xf8] sm:$0xff]
    %v479 = vld [vmem:[#allocation8 + $0x100] sm:$0xff]
    %v480 = vld [vmem:[#allocation8 + $0x108] sm:$0xff]
    %v481 = vld [vmem:[#allocation8 + $0x110] sm:$0xff]
    %v482 = vld [vmem:[#allocation8 + $0x118] sm:$0xff]
    %v483 = vld [vmem:[#allocation8 + $0x120] sm:$0xff]
    %v484 = vld [vmem:[#allocation8 + $0x128] sm:$0xff]
    %v485 = vld [vmem:[#allocation8 + $0x130] sm:$0xff]
    %v486 = vld [vmem:[#allocation8 + $0x138] sm:$0xff]
    %v487 = vld [vmem:[#allocation8 + $0x140] sm:$0xff]
    %v488 = vld [vmem:[#allocation8 + $0x148] sm:$0xff]
    %v489 = vld [vmem:[#allocation8 + $0x150] sm:$0xff]
    %v490 = vld [vmem:[#allocation8 + $0x158] sm:$0xff]
    %v491 = vld [vmem:[#allocation8 + $0x160] sm:$0xff]
    %v492 = vld [vmem:[#allocation8 + $0x168] sm:$0xff]
    %v493 = vld [vmem:[#allocation8 + $0x170] sm:$0xff]
    %v494 = vld [vmem:[#allocation8 + $0x178] sm:$0xff]
    %v495 = vld [vmem:[#allocation8 + $0x180] sm:$0xff]
    %v496 = vld [vmem:[#allocation8 + $0x188] sm:$0xff]
    %v497 = vld [vmem:[#allocation8 + $0x190] sm:$0xff]
    %v498 = vld [vmem:[#allocation8 + $0x198] sm:$0xff]
    %v499 = vld [vmem:[#allocation8 + $0x1a0] sm:$0xff]
    %v500 = vld [vmem:[#allocation8 + $0x1a8] sm:$0xff]
    %v501 = vld [vmem:[#allocation8 + $0x1b0] sm:$0xff]
    %v502 = vld [vmem:[#allocation8 + $0x1b8] sm:$0xff]
    %v503 = vld [vmem:[#allocation8 + $0x1c0] sm:$0xff]
    %v504 = vld [vmem:[#allocation8 + $0x1c8] sm:$0xff]
    %v505 = vld [vmem:[#allocation8 + $0x1d0] sm:$0xff]
    %v506 = vld [vmem:[#allocation8 + $0x1d8] sm:$0xff]
    %v507 = vld [vmem:[#allocation8 + $0x1e0] sm:$0xff]
    %v508 = vld [vmem:[#allocation8 + $0x1e8] sm:$0xff]
    %v509 = vld [vmem:[#allocation8 + $0x1f0] sm:$0xff]
    %v510 = vld [vmem:[#allocation8 + $0x1f8] sm:$0xff]
    %511 = vmatpush.msra.mxu0 %v462
    %512 = vmatpush.msra.mxu0 %v461
    %513 = vmatpush.msra.mxu0 %v460
    %514 = vmatpush.msra.mxu0 %v459
    %515 = vmatpush.msra.mxu0 %v458
    %516 = vmatpush.msra.mxu0 %v457
    %517 = vmatpush.msra.mxu0 %v456
    %518 = vmatpush.msra.mxu0 %v455
    %519 = vmatpush.msra.mxu0 %v454
    %520 = vmatpush.msra.mxu0 %v453
    %521 = vmatpush.msra.mxu0 %v452
    %522 = vmatpush.msra.mxu0 %v451
    %523 = vmatpush.msra.mxu0 %v450
    %524 = vmatpush.msra.mxu0 %v449
    %525 = vmatpush.msra.mxu0 %v448
    %526 = vmatpush.msra.mxu0 %v447
    %527 = vmatmul.f32.gmra.mxu0 %v437
    %v528 = vpop.f32.mrf.mxu0
    %v529 = vadd.f32 0.0, %v528
    %530 = vmatmul.f32.gmra.mxu0 %v441
    %v531 = vpop.f32.mrf.mxu0
    %v532 = vadd.f32 0.0, %v531
    %533 = vdwg.mxu0
    %534 = vmatpush.msra.mxu0 %v478
    %535 = vmatpush.msra.mxu0 %v477
    %536 = vmatpush.msra.mxu0 %v476
    %537 = vmatpush.msra.mxu0 %v475
    %538 = vmatpush.msra.mxu0 %v474
    %539 = vmatpush.msra.mxu0 %v473
    %540 = vmatpush.msra.mxu0 %v472
    %541 = vmatpush.msra.mxu0 %v471
    %542 = vmatpush.msra.mxu0 %v470
    %543 = vmatpush.msra.mxu0 %v469
    %544 = vmatpush.msra.mxu0 %v468
    %545 = vmatpush.msra.mxu0 %v467
    %546 = vmatpush.msra.mxu0 %v466
    %547 = vmatpush.msra.mxu0 %v465
    %548 = vmatpush.msra.mxu0 %v464
    %549 = vmatpush.msra.mxu0 %v463
    %550 = vmatmul.f32.gmra.mxu0 %v438
    %v551 = vpop.f32.mrf.mxu0
    %v552 = vadd.f32 %v529, %v551
    %553 = vmatmul.f32.gmra.mxu0 %v442
    %v554 = vpop.f32.mrf.mxu0
    %v555 = vadd.f32 %v532, %v554
    %556 = vdwg.mxu0
    %557 = vmatpush.msra.mxu0 %v494
    %558 = vmatpush.msra.mxu0 %v493
    %559 = vmatpush.msra.mxu0 %v492
    %560 = vmatpush.msra.mxu0 %v491
    %561 = vmatpush.msra.mxu0 %v490
    %562 = vmatpush.msra.mxu0 %v489
    %563 = vmatpush.msra.mxu0 %v488
    %564 = vmatpush.msra.mxu0 %v487
    %565 = vmatpush.msra.mxu0 %v486
    %566 = vmatpush.msra.mxu0 %v485
    %567 = vmatpush.msra.mxu0 %v484
    %568 = vmatpush.msra.mxu0 %v483
    %569 = vmatpush.msra.mxu0 %v482
    %570 = vmatpush.msra.mxu0 %v481
    %571 = vmatpush.msra.mxu0 %v480
    %572 = vmatpush.msra.mxu0 %v479
    %573 = vmatmul.f32.gmra.mxu0 %v439
    %v574 = vpop.f32.mrf.mxu0
    %v575 = vadd.f32 %v552, %v574
    %576 = vmatmul.f32.gmra.mxu0 %v443
    %v577 = vpop.f32.mrf.mxu0
    %v578 = vadd.f32 %v555, %v577
    %579 = vdwg.mxu0
    %580 = vmatpush.msra.mxu0 %v510
    %581 = vmatpush.msra.mxu0 %v509
    %582 = vmatpush.msra.mxu0 %v508
    %583 = vmatpush.msra.mxu0 %v507
    %584 = vmatpush.msra.mxu0 %v506
    %585 = vmatpush.msra.mxu0 %v505
    %586 = vmatpush.msra.mxu0 %v504
    %587 = vmatpush.msra.mxu0 %v503
    %588 = vmatpush.msra.mxu0 %v502
    %589 = vmatpush.msra.mxu0 %v501
    %590 = vmatpush.msra.mxu0 %v500
    %591 = vmatpush.msra.mxu0 %v499
    %592 = vmatpush.msra.mxu0 %v498
    %593 = vmatpush.msra.mxu0 %v497
    %594 = vmatpush.msra.mxu0 %v496
    %595 = vmatpush.msra.mxu0 %v495
    %596 = vmatmul.f32.gmra.mxu0 %v440
    %v597 = vpop.f32.mrf.mxu0
    %v598 = vadd.f32 %v575, %v597
    %599 = vmatmul.f32.gmra.mxu0 %v444
    %v600 = vpop.f32.mrf.mxu0
    %v601 = vadd.f32 %v578, %v600
    %602 = vdwg.mxu0
    %v603 = vadd.f32 %v445, %v598
    %v604 = vadd.f32 %v446, %v601
    %605 = vst [vmem:[#allocation10] sm:$0xff] %v603
    %606 = vst [vmem:[#allocation10 + $0x8] sm:$0xff] %v604
    // Predicated region
    $region38: #{tpu_custom_call.1} parent=1 // pred_check
      _
    $region39: #{tpu_custom_call.1} parent=1 // pred_check_branch
      %608 = sbr.rel (0) target = $region41
    $region40: #{tpu_custom_call.1} parent=1 // pred_region
      %610 = vsyncadd [#allocation4], 0
      %s611 = sshll.u32 [#allocation10], 4
      %s612 = int_to_ptr.vmem [resolvable:$true] %s611
      %s613 = sshll.u32 %s4, 4
      %s614 = int_to_ptr.hbm [resolvable:$true] %s613
      %619 = dma.vmem_to_hbm [thread:$0]  %s612, 256, %s614, [#allocation4], 128, 128, 8
    $region41: #{tpu_custom_call.1} parent=1 // pred_fallthru
      _
    // Predicated region
    $region42: #{tpu_custom_call.1} parent=1 // pred_check
      _
    $region43: #{tpu_custom_call.1} parent=1 // pred_check_branch
      %621 = sbr.rel (0) target = $region45
    $region44: #{tpu_custom_call.1} parent=1 // pred_region
      %623 = dma.done [#allocation4], 256
    $region45: #{tpu_custom_call.1} parent=1 // pred_fallthru
      _
    %624 = vsyncpa [#allocation3], 1
    %625 = vsyncpa [#allocation6], 1
    %626 = vsyncpa [#allocation9], 1
    %627 = vsyncpa [#allocation4], 1

</llo_original>
